<compile_context>
chip_gen: v6e
topology: v6e:2x2x1
jax: 0.10.0
libtpu: 0.0.40
codegen_flags: <defaults>
</compile_context>

<pallas_src>
import functools

import jax
import jax.numpy as jnp
from jax.experimental import pallas as pl
from jax.experimental.pallas import tpu as pltpu

_TILE_BYTES = 2 * 1024 * 1024  # per-input, per-buffer VMEM budget for a tile


def _pick_tile_n(n, c, itemsize):
    rows = _TILE_BYTES // max(1, c * itemsize)
    rows = max(8, (int(rows) // 8) * 8)
    rows = min(rows, 1024)
    if rows >= n:
        return n          # single full block (full-dim block is always legal)
    return rows           # multiple of 8; last block may be ragged (masked)


def _distill_block_kernel(x_ref, s_ref, t_ref, out_ref, *,
                          temperature, alpha, scale, n_total, tile_n):
    """Partial (already alpha/T^2-weighted) loss for one (TILE_N, C) block."""
    x = x_ref[...].astype(jnp.float32)          # (tile_n, C) student logits
    s = s_ref[...].astype(jnp.float32)          # (tile_n, C) teacher logits
    t = t_ref[...]                              # (tile_n, 1) int32 labels

    tn, c = x.shape
    t_is_one = (float(temperature) == 1.0)
    inv_t = jnp.float32(1.0 / temperature)

    # Shared row-max of the student logits: one XLU pass feeds both the
    # tempered and the raw log-sum-exp.
    m = jnp.max(x, axis=1, keepdims=True)                    # (tile_n, 1)
    d = x - m                                                # (tile_n, C)

    if t_is_one:
        z_t = jnp.sum(jnp.exp(d), axis=1, keepdims=True)
        lse_t = jnp.log(z_t) + m          # log-sum-exp of x/T (T == 1)
        lse_1 = lse_t                     # raw log-sum-exp reused (fast path)
    else:
        z_t = jnp.sum(jnp.exp(d * inv_t), axis=1, keepdims=True)
        lse_t = jnp.log(z_t) + m * inv_t
        z_1 = jnp.sum(jnp.exp(d), axis=1, keepdims=True)
        lse_1 = jnp.log(z_1) + m

    # Teacher softmax folded into per-row scalars (sum_c q = 1):
    #   soft_ce_i = lse_t_i - (sum_c e_s_ic * x_ic) / (T * sum_c e_s_ic)
    m_s = jnp.max(s, axis=1, keepdims=True)
    if t_is_one:
        e_s = jnp.exp(s - m_s)
    else:
        e_s = jnp.exp((s - m_s) * inv_t)
    denom = jnp.sum(e_s, axis=1, keepdims=True)              # (tile_n, 1)
    num = jnp.sum(e_s * x, axis=1, keepdims=True)            # (tile_n, 1)
    dot = num / denom                 # per-row scalar divide (negligible cost)
    if not t_is_one:
        dot = dot * inv_t
    soft_ce = lse_t - dot                                    # (tile_n, 1)

    # Hard CE: lse(x)_i - x[i, target_i] via a one-hot select (no gather op).
    class_ids = jax.lax.broadcasted_iota(jnp.int32, (tn, c), 1)
    gathered = jnp.sum(jnp.where(class_ids == t, x, 0.0), axis=1, keepdims=True)
    hard_ce = lse_1 - gathered                               # (tile_n, 1)

    # Ragged last block: zero per-row contributions of rows >= N (select, so
    # any garbage/NaN from the padded tile rows is discarded).  Only emitted
    # when N is not a multiple of tile_n (static check).
    if n_total % tile_n != 0:
        i = pl.program_id(0)
        row_ids = i * tile_n + jax.lax.broadcasted_iota(jnp.int32, (tn, 1), 0)
        valid = row_ids < n_total
        soft_ce = jnp.where(valid, soft_ce, 0.0)
        hard_ce = jnp.where(valid, hard_ce, 0.0)

    soft_sum = jnp.sum(soft_ce, axis=0, keepdims=True)       # (1, 1)
    hard_sum = jnp.sum(hard_ce, axis=0, keepdims=True)       # (1, 1)

    soft_w = (1.0 - alpha) * ((temperature * temperature) if scale else 1.0)
    partial = jnp.float32(soft_w) * soft_sum + jnp.float32(alpha) * hard_sum
    out_ref[...] = jnp.reshape(partial, (1, 1, 1))


def alpha_distillation_loss(inputs, soft_targets, hard_targets, *,
                            temperature=1.0, scale=True, alpha=0.5,
                            size_average=True, tile_n=None):
    """inputs, soft_targets: (N, C) float (f32 or bf16); hard_targets: (N,) int."""
    n, c = inputs.shape
    t2d = hard_targets.astype(jnp.int32).reshape(n, 1)

    if tile_n is None:
        tile_n = _pick_tile_n(n, c, jnp.dtype(inputs.dtype).itemsize)
    tile_n = int(tile_n)
    num_blocks = pl.cdiv(n, tile_n)

    kernel = functools.partial(
        _distill_block_kernel,
        temperature=float(temperature),
        alpha=float(alpha),
        scale=bool(scale),
        n_total=int(n),
        tile_n=tile_n,
    )

    partials = pl.pallas_call(
        kernel,
        out_shape=jax.ShapeDtypeStruct((num_blocks, 1, 1), jnp.float32),
        grid=(num_blocks,),
        in_specs=[
            pl.BlockSpec((tile_n, c), lambda i: (i, 0)),   # student logits
            pl.BlockSpec((tile_n, c), lambda i: (i, 0)),   # teacher logits
            pl.BlockSpec((tile_n, 1), lambda i: (i, 0)),   # labels
        ],
        out_specs=pl.BlockSpec((1, 1, 1), lambda i: (i, 0, 0)),
        compiler_params=pltpu.CompilerParams(
            dimension_semantics=("parallel",)),   # megacore-shardable on v7x
    )(inputs, soft_targets, t2d)

    loss = jnp.sum(partials)           # tiny (num_blocks,) reduction outside
    if size_average:
        loss = loss / jnp.float32(n)   # true N, not block count
    return loss


def _reference(inputs, soft_targets, hard_targets, *, temperature, scale,
               alpha, size_average):
    x = inputs.astype(jnp.float32)
    s = soft_targets.astype(jnp.float32)
    log_p = jax.nn.log_softmax(x / temperature, axis=1)
    q = jax.nn.softmax(s / temperature, axis=1)
    soft_loss = jnp.sum(-jnp.sum(q * log_p, axis=1))
    if scale:
        soft_loss = soft_loss * temperature ** 2
    log_px = jax.nn.log_softmax(x, axis=1)
    hard_loss = -jnp.sum(jnp.take_along_axis(
        log_px, hard_targets.astype(jnp.int32)[:, None], axis=1))
    loss = (1.0 - alpha) * soft_loss + alpha * hard_loss
    if size_average:
        loss = loss / x.shape[0]
    return loss


if __name__ == "__main__":
    key = jax.random.PRNGKey(0)
    k1, k2, k3, k4, k5, k6, k7, k8, k9 = jax.random.split(key, 9)

    # Case 1: single block (tile == full array), T != 1, size_average.
    N1, C1 = 8, 32
    x1 = jax.random.normal(k1, (N1, C1), dtype=jnp.float32)
    s1 = jax.random.normal(k2, (N1, C1), dtype=jnp.float32)
    y1 = jax.random.randint(k3, (N1,), 0, C1, dtype=jnp.int32)
    out1 = alpha_distillation_loss(x1, s1, y1, temperature=2.0, scale=True,
                                   alpha=0.5, size_average=True)
    out1 = jax.block_until_ready(out1)
    ref1 = _reference(x1, s1, y1, temperature=2.0, scale=True, alpha=0.5,
                      size_average=True)
    assert jnp.allclose(out1, ref1, rtol=1e-5, atol=1e-5), (out1, ref1)

    # Case 2: multi-block grid with ragged last block + T == 1 fast path.
    N2, C2 = 20, 64
    x2 = jax.random.normal(k4, (N2, C2), dtype=jnp.float32)
    s2 = jax.random.normal(k5, (N2, C2), dtype=jnp.float32)
    y2 = jax.random.randint(k6, (N2,), 0, C2, dtype=jnp.int32)
    out2 = alpha_distillation_loss(x2, s2, y2, temperature=1.0, scale=True,
                                   alpha=0.3, size_average=False, tile_n=8)
    out2 = jax.block_until_ready(out2)
    ref2 = _reference(x2, s2, y2, temperature=1.0, scale=True, alpha=0.3,
                      size_average=False)
    assert jnp.allclose(out2, ref2, rtol=1e-5, atol=1e-5), (out2, ref2)

    # Case 3: bf16 logits, multi-block, T != 1, no scaling.
    N3, C3 = 24, 128
    x3 = jax.random.normal(k7, (N3, C3), dtype=jnp.bfloat16)
    s3 = jax.random.normal(k8, (N3, C3), dtype=jnp.bfloat16)
    y3 = jax.random.randint(k9, (N3,), 0, C3, dtype=jnp.int32)
    out3 = alpha_distillation_loss(x3, s3, y3, temperature=4.0, scale=False,
                                   alpha=0.7, size_average=True, tile_n=8)
    out3 = jax.block_until_ready(out3)
    ref3 = _reference(x3, s3, y3, temperature=4.0, scale=False, alpha=0.7,
                      size_average=True)
    assert jnp.allclose(out3, ref3, rtol=2e-2, atol=2e-2), (out3, ref3)

    print("KERNEL_OK")
</pallas_src>

<mosaic_0001>
module attributes {stable_mosaic.version = 11 : i64} {
  func.func @_distill_block_kernel(%arg0: i32, %arg1: memref<8x32xf32, #tpu.memory_space<vmem>>, %arg2: memref<8x32xf32, #tpu.memory_space<vmem>>, %arg3: memref<8x1xi32, #tpu.memory_space<vmem>>, %arg4: memref<1x1x1xf32, #tpu.memory_space<vmem>>) attributes {dimension_semantics = [#tpu.dimension_semantics<parallel>], iteration_bounds = array<i64: 1>, scalar_prefetch = 0 : i64, scratch_operands = 0 : i64, tpu.core_type = #tpu.core_type<tc>, window_params = [{transform_indices = @transform_0, window_bounds = array<i64: 8, 32>}, {transform_indices = @transform_1, window_bounds = array<i64: 8, 32>}, {transform_indices = @transform_2, window_bounds = array<i64: 8, 1>}, {transform_indices = @transform_3, window_bounds = array<i64: 1, 1, 1>}]} {
    %c0 = arith.constant 0 : index
    %c0_0 = arith.constant 0 : index
    %0 = vector.load %arg1[%c0, %c0_0] : memref<8x32xf32, #tpu.memory_space<vmem>>, vector<8x32xf32>
    %c0_1 = arith.constant 0 : index
    %c0_2 = arith.constant 0 : index
    %1 = vector.load %arg2[%c0_1, %c0_2] : memref<8x32xf32, #tpu.memory_space<vmem>>, vector<8x32xf32>
    %c0_3 = arith.constant 0 : index
    %c0_4 = arith.constant 0 : index
    %2 = vector.load %arg3[%c0_3, %c0_4] : memref<8x1xi32, #tpu.memory_space<vmem>>, vector<8x1xi32>
    %cst = arith.constant dense<0xFF800000> : vector<8xf32>
    %3 = vector.multi_reduction <maximumf>, %0, %cst [1] : vector<8x32xf32> to vector<8xf32>
    %4 = vector.shape_cast %3 : vector<8xf32> to vector<8x1xf32>
    %5 = vector.broadcast %4 : vector<8x1xf32> to vector<8x32xf32>
    %6 = arith.subf %0, %5 : vector<8x32xf32>
    %cst_5 = arith.constant 5.000000e-01 : f32
    %7 = vector.broadcast %cst_5 : f32 to vector<8x32xf32>
    %8 = arith.mulf %6, %7 : vector<8x32xf32>
    %9 = math.exp %8 : vector<8x32xf32>
    %cst_6 = arith.constant dense<0.000000e+00> : vector<8xf32>
    %10 = vector.multi_reduction <add>, %9, %cst_6 [1] : vector<8x32xf32> to vector<8xf32>
    %11 = vector.shape_cast %10 : vector<8xf32> to vector<8x1xf32>
    %12 = math.log %11 : vector<8x1xf32>
    %cst_7 = arith.constant 5.000000e-01 : f32
    %13 = vector.broadcast %cst_7 : f32 to vector<8x1xf32>
    %14 = arith.mulf %4, %13 : vector<8x1xf32>
    %15 = arith.addf %12, %14 : vector<8x1xf32>
    %16 = math.exp %6 : vector<8x32xf32>
    %cst_8 = arith.constant dense<0.000000e+00> : vector<8xf32>
    %17 = vector.multi_reduction <add>, %16, %cst_8 [1] : vector<8x32xf32> to vector<8xf32>
    %18 = vector.shape_cast %17 : vector<8xf32> to vector<8x1xf32>
    %19 = math.log %18 : vector<8x1xf32>
    %20 = arith.addf %19, %4 : vector<8x1xf32>
    %cst_9 = arith.constant dense<0xFF800000> : vector<8xf32>
    %21 = vector.multi_reduction <maximumf>, %1, %cst_9 [1] : vector<8x32xf32> to vector<8xf32>
    %22 = vector.shape_cast %21 : vector<8xf32> to vector<8x1xf32>
    %23 = vector.broadcast %22 : vector<8x1xf32> to vector<8x32xf32>
    %24 = arith.subf %1, %23 : vector<8x32xf32>
    %cst_10 = arith.constant 5.000000e-01 : f32
    %25 = vector.broadcast %cst_10 : f32 to vector<8x32xf32>
    %26 = arith.mulf %24, %25 : vector<8x32xf32>
    %27 = math.exp %26 : vector<8x32xf32>
    %cst_11 = arith.constant dense<0.000000e+00> : vector<8xf32>
    %28 = vector.multi_reduction <add>, %27, %cst_11 [1] : vector<8x32xf32> to vector<8xf32>
    %29 = vector.shape_cast %28 : vector<8xf32> to vector<8x1xf32>
    %30 = arith.mulf %27, %0 : vector<8x32xf32>
    %cst_12 = arith.constant dense<0.000000e+00> : vector<8xf32>
    %31 = vector.multi_reduction <add>, %30, %cst_12 [1] : vector<8x32xf32> to vector<8xf32>
    %32 = vector.shape_cast %31 : vector<8xf32> to vector<8x1xf32>
    %33 = arith.divf %32, %29 : vector<8x1xf32>
    %cst_13 = arith.constant 5.000000e-01 : f32
    %34 = vector.broadcast %cst_13 : f32 to vector<8x1xf32>
    %35 = arith.mulf %33, %34 : vector<8x1xf32>
    %36 = arith.subf %15, %35 : vector<8x1xf32>
    %37 = tpu.iota {dimensions = array<i32: 1>} : vector<8x32xi32>
    %38 = vector.broadcast %2 : vector<8x1xi32> to vector<8x32xi32>
    %39 = arith.cmpi eq, %37, %38 : vector<8x32xi32>
    %cst_14 = arith.constant 0.000000e+00 : f32
    %40 = vector.broadcast %cst_14 : f32 to vector<8x32xf32>
    %41 = arith.select %39, %0, %40 : vector<8x32xi1>, vector<8x32xf32>
    %cst_15 = arith.constant dense<0.000000e+00> : vector<8xf32>
    %42 = vector.multi_reduction <add>, %41, %cst_15 [1] : vector<8x32xf32> to vector<8xf32>
    %43 = vector.shape_cast %42 : vector<8xf32> to vector<8x1xf32>
    %44 = arith.subf %20, %43 : vector<8x1xf32>
    %cst_16 = arith.constant dense<0.000000e+00> : vector<1xf32>
    %45 = vector.multi_reduction <add>, %36, %cst_16 [0] : vector<8x1xf32> to vector<1xf32>
    %46 = vector.shape_cast %45 : vector<1xf32> to vector<1x1xf32>
    %cst_17 = arith.constant dense<0.000000e+00> : vector<1xf32>
    %47 = vector.multi_reduction <add>, %44, %cst_17 [0] : vector<8x1xf32> to vector<1xf32>
    %48 = vector.shape_cast %47 : vector<1xf32> to vector<1x1xf32>
    %cst_18 = arith.constant 2.000000e+00 : f32
    %49 = vector.broadcast %cst_18 : f32 to vector<1x1xf32>
    %50 = arith.mulf %49, %46 : vector<1x1xf32>
    %cst_19 = arith.constant 5.000000e-01 : f32
    %51 = vector.broadcast %cst_19 : f32 to vector<1x1xf32>
    %52 = arith.mulf %51, %48 : vector<1x1xf32>
    %53 = arith.addf %50, %52 : vector<1x1xf32>
    %54 = vector.shape_cast %53 : vector<1x1xf32> to vector<1x1x1xf32>
    %c0_20 = arith.constant 0 : index
    %c0_21 = arith.constant 0 : index
    %c0_22 = arith.constant 0 : index
    %55 = vector.load %arg4[%c0_20, %c0_21, %c0_22] : memref<1x1x1xf32, #tpu.memory_space<vmem>>, vector<1x1x1xf32>
    tpu.vector_store %arg4[%c0_20, %c0_21, %c0_22], %54 {strides = array<i32>} : memref<1x1x1xf32, #tpu.memory_space<vmem>>, vector<1x1x1xf32>,
    return
  }
  func.func @transform_0(%arg0: i32) -> (i32, i32) {
    %c0_i32 = arith.constant 0 : i32
    %c0_i32_0 = arith.constant 0 : i32
    return %arg0, %c0_i32 : i32, i32
  }
  func.func @transform_1(%arg0: i32) -> (i32, i32) {
    %c0_i32 = arith.constant 0 : i32
    %c0_i32_0 = arith.constant 0 : i32
    return %arg0, %c0_i32 : i32, i32
  }
  func.func @transform_2(%arg0: i32) -> (i32, i32) {
    %c0_i32 = arith.constant 0 : i32
    %c0_i32_0 = arith.constant 0 : i32
    return %arg0, %c0_i32 : i32, i32
  }
  func.func @transform_3(%arg0: i32) -> (i32, i32, i32) {
    %c0_i32 = arith.constant 0 : i32
    %c0_i32_0 = arith.constant 0 : i32
    %c0_i32_1 = arith.constant 0 : i32
    return %arg0, %c0_i32, %c0_i32_0 : i32, i32, i32
  }
}

</mosaic_0001>

<llo_original>
// kernel: tpu_custom_call.1
$region0: #{tpu_custom_call.1}
  #allocation0 [shape = 'u32[]', space=smem, size = 0x4, offset = 0x4, fixed_abs, tag = 'smem constant byte address 0x4 - core index']
  #allocation1 [shape = 'u32[144,128]{1,0:T(1,128)}', space=vmem, size = 0x12000, scoped, tag = 'internal scratch']
  %s0 = inlined_call_operand.vmem [shape: f32[8,32], index: 0, kind: input, shape index: {}]
  %s1 = inlined_call_operand.hbm [shape: f32[8,32], index: 1, kind: input, shape index: {}]
  %s2 = inlined_call_operand.vmem [shape: s32[8,1], index: 2, kind: input, shape index: {}]
  %s3 = inlined_call_operand.hbm [shape: f32[1,1,1], index: 3, kind: output, shape index: {}]
  %s4 = sld [smem:[#allocation0]]
  $region26: #{tpu_custom_call.1} parent=0
    _
  %s6 = ssub.s32 1, %s4
  %s7 = scalar_select 0, %s6, %s4
  $region1: #{tpu_custom_call.1} parent=0
    #allocation2 [shape = 'u8[4096]{0}', space=vmem, size = 0x1000, scoped, tag = 'input window, operand 1, single buffered']
    #allocation3 [shape = 's32[1]{0}', space=sflag, size = 0x4, scoped, tag = 'scoped memory for tpu_custom_call.1']
    #allocation4 [shape = 's32[1]{0}', space=sflag, size = 0x4, scoped, tag = 'scoped memory for tpu_custom_call.1']
    #allocation5 [shape = 'u8[512]{0}', space=vmem, size = 0x400, scoped, tag = 'output window, operand 0, single buffered']
    %8 = vsyncpa [#allocation3], 0
    %9 = vsyncpa [#allocation4], 0
    // Predicated region
    $region2: #{tpu_custom_call.1} parent=1 // pred_check
      _
    $region3: #{tpu_custom_call.1} parent=1 // pred_check_branch
      %11 = sbr.rel (0) target = $region5
    $region4: #{tpu_custom_call.1} parent=1 // pred_region
      _
    $region5: #{tpu_custom_call.1} parent=1 // pred_fallthru
      _
    // Predicated region
    $region6: #{tpu_custom_call.1} parent=1 // pred_check
      _
    $region7: #{tpu_custom_call.1} parent=1 // pred_check_branch
      %13 = sbr.rel (0) target = $region9
    $region8: #{tpu_custom_call.1} parent=1 // pred_region
      %s15 = ssub.s32 128, 128
      %16 = vsyncadd [#allocation3], %s15
      %s18 = sshll.u32 [#allocation2], 4
      %s19 = int_to_ptr.vmem [resolvable:$true] %s18
      %21 = dma.hbm_to_vmem [thread:$0]  %s1, 128, %s19, [#allocation3]
    $region9: #{tpu_custom_call.1} parent=1 // pred_fallthru
      _
    // Predicated region
    $region10: #{tpu_custom_call.1} parent=1 // pred_check
      _
    $region11: #{tpu_custom_call.1} parent=1 // pred_check_branch
      %23 = sbr.rel (0) target = $region13
    $region12: #{tpu_custom_call.1} parent=1 // pred_region
      _
    $region13: #{tpu_custom_call.1} parent=1 // pred_fallthru
      _
    // Predicated region
    $region14: #{tpu_custom_call.1} parent=1 // pred_check
      _
    $region15: #{tpu_custom_call.1} parent=1 // pred_check_branch
      %25 = sbr.rel (0) target = $region17
    $region16: #{tpu_custom_call.1} parent=1 // pred_region
      %26 = dma.done [#allocation3], 128
    $region17: #{tpu_custom_call.1} parent=1 // pred_fallthru
      _
    %v27 = vld [vmem:[%s0] sm:$0xff]
    %v28 = vld [vmem:[#allocation2] sm:$0xff]
    %v29 = vld [vmem:[%s2] sm:$0xff]
    %vm30 = vcmask 261120
    %v31 = vsel %vm30, %v27, -inf
    %32 = vmax.xlane.f32.xlu0 %v31
    %v33 = vpop.xlane.xlu0 %32
    %v34 = vsub.f32 %v27, %v33
    %v35 = vmul.f32 %v34, 0.5
    %v36 = vmul.f32 %v35, 1.442695
    %v37 = vpow.pop %v36
    %v38 = vsel %vm30, %v37, 0.0
    %39 = vadd.xlane.f32.xlu0 %v38
    %v40 = vpop.xlane.xlu0 %39
    %v41 = vlog2.pop %v40
    %v42 = vmul.f32 %v41, 0.6931472
    %v43 = vmul.f32 %v33, 0.5
    %v44 = vadd.f32 %v42, %v43
    %v45 = vmul.f32 %v34, 1.442695
    %v46 = vpow.pop %v45
    %v47 = vsel %vm30, %v46, 0.0
    %48 = vadd.xlane.f32.xlu0 %v47
    %v49 = vpop.xlane.xlu0 %48
    %v50 = vlog2.pop %v49
    %v51 = vmul.f32 %v50, 0.6931472
    %v52 = vadd.f32 %v51, %v33
    %v53 = vsel %vm30, %v28, -inf
    %54 = vmax.xlane.f32.xlu0 %v53
    %v55 = vpop.xlane.xlu0 %54
    %v56 = vsub.f32 %v28, %v55
    %v57 = vmul.f32 %v56, 0.5
    %v58 = vmul.f32 %v57, 1.442695
    %v59 = vpow.pop %v58
    %v60 = vsel %vm30, %v59, 0.0
    %61 = vadd.xlane.f32.xlu0 %v60
    %v62 = vpop.xlane.xlu0 %61
    %v63 = vmul.f32 %v59, %v27
    %v64 = vsel %vm30, %v63, 0.0
    %65 = vadd.xlane.f32.xlu0 %v64
    %v66 = vpop.xlane.xlu0 %65
    %v67 = vrcp.pop %v62
    %v68 = vmul.f32 %v66, %v67
    %v69 = vmul.f32 %v68, 0.5
    %v70 = vsub.f32 %v44, %v69
    %v71 = vlaneseq
    %v72 = vand.u32 %v71, 127
    %73 = vset.pattern.permute.xlu0 0
    %74 = vperm.xlu0 %73, %v29
    %v75 = vpop.permute.xlu0 %74
    %vm76 = vcmp.eq.s32.totalorder %v72, %v75
    %v77 = vsel %vm76, %v27, 0.0
    %v78 = vsel %vm30, %v77, 0.0
    %79 = vadd.xlane.f32.xlu0 %v78
    %v80 = vpop.xlane.xlu0 %79
    %v81 = vsub.f32 %v52, %v80
    %v82 = vrot.slane %v70, 4
    %v83 = vadd.f32 %v70, %v82
    %v84 = vrot.slane %v83, 2
    %v85 = vadd.f32 %v83, %v84
    %v86 = vrot.slane %v85, 1
    %v87 = vadd.f32 %v85, %v86
    %v88 = vrot.slane %v81, 4
    %v89 = vadd.f32 %v81, %v88
    %v90 = vrot.slane %v89, 2
    %v91 = vadd.f32 %v89, %v90
    %v92 = vrot.slane %v91, 1
    %v93 = vadd.f32 %v91, %v92
    %v94 = vmul.f32 %v87, 2.0
    %v95 = vmul.f32 %v93, 0.5
    %v96 = vadd.f32 %v94, %v95
    %vm97 = vcmask 0
    %98 = vst.msk [vmem:[#allocation5] sm:$0x1] %vm97, %v96
    // Predicated region
    $region18: #{tpu_custom_call.1} parent=1 // pred_check
      _
    $region19: #{tpu_custom_call.1} parent=1 // pred_check_branch
      %100 = sbr.rel (0) target = $region21
    $region20: #{tpu_custom_call.1} parent=1 // pred_region
      %s102 = ssub.s32 16, 16
      %103 = vsyncadd [#allocation4], %s102
      %s105 = sshll.u32 [#allocation5], 4
      %s106 = int_to_ptr.vmem [resolvable:$true] %s105
      %108 = dma.vmem_to_hbm [thread:$0]  %s106, 16, %s3, [#allocation4]
    $region21: #{tpu_custom_call.1} parent=1 // pred_fallthru
      _
    // Predicated region
    $region22: #{tpu_custom_call.1} parent=1 // pred_check
      _
    $region23: #{tpu_custom_call.1} parent=1 // pred_check_branch
      %110 = sbr.rel (0) target = $region25
    $region24: #{tpu_custom_call.1} parent=1 // pred_region
      %111 = dma.done [#allocation4], 16
    $region25: #{tpu_custom_call.1} parent=1 // pred_fallthru
      _
    %112 = vsyncpa [#allocation3], 1
    %113 = vsyncpa [#allocation4], 1

</llo_original>
